<compile_context>
chip_gen: v6e
topology: v6e:2x2x1
jax: 0.10.0
libtpu: 0.0.40
codegen_flags: <defaults>
</compile_context>

<pallas_src>
import functools

import jax
import jax.numpy as jnp
from jax.experimental import pallas as pl
from jax.experimental.pallas import tpu as pltpu


# ----------------------------------------------------------------------------
# Kernel: whole 3-layer MLP fused, batch-on-lanes layout.
#   xT:  (z_dim, tile)      W1^T: (N, z_dim)   b1: (N, 1)
#   h1:  (N, tile)          W2^T: (N, N)       b2: (N, 1)
#   h2:  (N, tile)          w3:   (N, 1)       b3: SMEM scalar
#   out: (1, tile)   <- lane-dense
# ----------------------------------------------------------------------------
def _d_net_gauss_kernel(seed_ref, xT_ref, w1T_ref, b1_ref, w2T_ref, b2_ref,
                        w3_ref, b3_ref, o_ref, *, training, p):
    xT = xT_ref[...]                                       # (z_dim, tile)

    if training:
        # One hardware-PRNG reseed per grid step; both dropout layers draw
        # from the same stream.  Keep test is done in the integer domain:
        # keep iff bits >= p * 2^32  (P(drop) = p), then scale by 1/(1-p).
        pltpu.prng_seed(seed_ref[0] + pl.program_id(0))
        thresh = jnp.uint32(int(p * (1 << 32)))
        scale = jnp.float32(1.0 / (1.0 - p))

        def dropout(v):
            bits = pltpu.bitcast(pltpu.prng_random_bits(v.shape), jnp.uint32)
            return jnp.where(bits >= thresh, v * scale, 0.0)
    else:
        def dropout(v):                                    # eval: identity
            return v

    # ---- layer 1: Linear(z_dim, N) -> dropout -> relu  (MXU + VPU) ----
    h = jnp.dot(w1T_ref[...], xT, preferred_element_type=jnp.float32) + b1_ref[...]
    h = jnp.maximum(dropout(h), 0.0)                       # (N, tile)

    # ---- layer 2: Linear(N, N) -> dropout -> relu ----
    h = jnp.dot(w2T_ref[...], h, preferred_element_type=jnp.float32) + b2_ref[...]
    h = jnp.maximum(dropout(h), 0.0)                       # (N, tile)

    # ---- layer 3: Linear(N, 1) -> sigmoid ----
    # 1-wide output: VPU multiply + XLU sublane reduce instead of a padded
    # MXU matmul.  Result is naturally lane-dense (1, tile).
    logits = jnp.sum(h * w3_ref[...], axis=0, keepdims=True) + b3_ref[0]
    o_ref[...] = jax.nn.sigmoid(logits).astype(o_ref.dtype)


# ----------------------------------------------------------------------------
# Wrapper
# ----------------------------------------------------------------------------
def d_net_gauss_forward(x, params, *, training=False, p=0.2, seed=0,
                        max_batch_tile=1024):
    B, z_dim = x.shape
    N = params["w1"].shape[1]

    if B <= max_batch_tile:
        batch_tile = B                      # single step, whole batch on lanes
        B_pad = B
    else:
        batch_tile = max_batch_tile         # multi-step: tile must be k*128
        assert batch_tile % 128 == 0, "max_batch_tile must be a multiple of 128"
        B_pad = pl.cdiv(B, batch_tile) * batch_tile

    # Batch-on-lanes: transpose activations once in XLA (cheap plumbing);
    # pad batch with zeros so every tile is full (padded cols sliced off below).
    xT = x.T                                                # (z_dim, B)
    if B_pad != B:
        xT = jnp.pad(xT, ((0, 0), (0, B_pad - B)))

    w1T = params["w1"].T                                    # (N, z_dim)
    w2T = params["w2"].T                                    # (N, N)
    b1 = params["b1"].reshape(N, 1)
    b2 = params["b2"].reshape(N, 1)
    w3 = params["w3"].reshape(N, 1)
    b3 = params["b3"].reshape(1)                            # SMEM scalar
    seed_arr = jnp.asarray([seed], dtype=jnp.int32)         # runtime seed (SMEM)

    kernel = functools.partial(_d_net_gauss_kernel, training=training, p=p)
    smem = pltpu.MemorySpace.SMEM

    out = pl.pallas_call(
        kernel,
        out_shape=jax.ShapeDtypeStruct((1, B_pad), x.dtype),
        grid=(B_pad // batch_tile,),
        in_specs=[
            pl.BlockSpec(memory_space=smem),                      # seed (1,)
            pl.BlockSpec((z_dim, batch_tile), lambda i: (0, i)),  # x^T tile
            pl.BlockSpec((N, z_dim), lambda i: (0, 0)),           # W1^T
            pl.BlockSpec((N, 1), lambda i: (0, 0)),               # b1
            pl.BlockSpec((N, N), lambda i: (0, 0)),               # W2^T
            pl.BlockSpec((N, 1), lambda i: (0, 0)),               # b2
            pl.BlockSpec((N, 1), lambda i: (0, 0)),               # w3
            pl.BlockSpec(memory_space=smem),                      # b3 (1,)
        ],
        out_specs=pl.BlockSpec((1, batch_tile), lambda i: (0, i)),  # lane-dense
        compiler_params=pltpu.CompilerParams(
            dimension_semantics=("parallel",)),
    )(seed_arr, xT, w1T, b1, w2T, b2, w3, b3)

    # back to the PyTorch output shape (B, 1)
    return out[:, :B].reshape(B, 1)


# ----------------------------------------------------------------------------
# Deterministic parameter init (mimics nn.Linear default: U(-1/sqrt(fan_in),
# +1/sqrt(fan_in)) for both weight and bias).  Weights stored (in, out).
# ----------------------------------------------------------------------------
def init_params(key, z_dim, N, dtype=jnp.float32):
    ks = jax.random.split(key, 6)

    def lin(kw, kb, fan_in, fan_out):
        bound = 1.0 / (fan_in ** 0.5)
        w = jax.random.uniform(kw, (fan_in, fan_out), dtype, -bound, bound)
        b = jax.random.uniform(kb, (1, fan_out), dtype, -bound, bound)
        return w, b

    w1, b1 = lin(ks[0], ks[1], z_dim, N)
    w2, b2 = lin(ks[2], ks[3], N, N)
    w3, b3 = lin(ks[4], ks[5], N, 1)
    return {"w1": w1, "b1": b1, "w2": w2, "b2": b2, "w3": w3, "b3": b3}


# Pure-JAX reference of the eval-mode forward (dropout = identity).
def _reference(x, p):
    h = jnp.maximum(x @ p["w1"] + p["b1"], 0.0)
    h = jnp.maximum(h @ p["w2"] + p["b2"], 0.0)
    return jax.nn.sigmoid(h @ p["w3"] + p["b3"])


if __name__ == "__main__":
    key = jax.random.PRNGKey(0)
    k_x, k_p, k_x2 = jax.random.split(key, 3)

    z_dim, N = 8, 32
    params = init_params(k_p, z_dim, N)

    # Small batch: single whole-batch tile, grid=(1,).
    B = 16
    x = jax.random.normal(k_x, (B, z_dim), dtype=jnp.float32)
    out = jax.block_until_ready(d_net_gauss_forward(x, params, training=False))
    ref = _reference(x, params)
    assert out.shape == (B, 1)
    assert jnp.allclose(out, ref, atol=1e-5, rtol=1e-5), "mismatch vs reference (small batch)"

    # Larger batch: exercises multi-step grid, 128-lane tiles, and padding.
    B2 = 300
    x2 = jax.random.normal(k_x2, (B2, z_dim), dtype=jnp.float32)
    out2 = jax.block_until_ready(
        d_net_gauss_forward(x2, params, training=False, max_batch_tile=128))
    ref2 = _reference(x2, params)
    assert out2.shape == (B2, 1)
    assert jnp.allclose(out2, ref2, atol=1e-5, rtol=1e-5), "mismatch vs reference (tiled batch)"

    # Training-mode dropout (TPU hardware PRNG, runtime seed) is available via
    # d_net_gauss_forward(..., training=True, seed=step); not numerically
    # compared here since the RNG stream differs from torch's.
    print("KERNEL_OK")
</pallas_src>

<mosaic_0001>
module attributes {stable_mosaic.version = 11 : i64} {
  func.func @_d_net_gauss_kernel(%arg0: i32, %arg1: memref<1xi32, #tpu.memory_space<smem>>, %arg2: memref<8x16xf32, #tpu.memory_space<vmem>>, %arg3: memref<32x8xf32, #tpu.memory_space<vmem>>, %arg4: memref<32x1xf32, #tpu.memory_space<vmem>>, %arg5: memref<32x32xf32, #tpu.memory_space<vmem>>, %arg6: memref<32x1xf32, #tpu.memory_space<vmem>>, %arg7: memref<32x1xf32, #tpu.memory_space<vmem>>, %arg8: memref<1xf32, #tpu.memory_space<smem>>, %arg9: memref<1x16xf32, #tpu.memory_space<vmem>>) attributes {dimension_semantics = [#tpu.dimension_semantics<parallel>], iteration_bounds = array<i64: 1>, scalar_prefetch = 0 : i64, scratch_operands = 0 : i64, tpu.core_type = #tpu.core_type<tc>, window_params = [{transform_indices = @transform_0, window_bounds = array<i64: 1>}, {transform_indices = @transform_1, window_bounds = array<i64: 8, 16>}, {pipeline_mode = #tpu.pipeline_mode<synchronous>, transform_indices = @transform_2, window_bounds = array<i64: 32, 8>}, {pipeline_mode = #tpu.pipeline_mode<synchronous>, transform_indices = @transform_3, window_bounds = array<i64: 32, 1>}, {pipeline_mode = #tpu.pipeline_mode<synchronous>, transform_indices = @transform_4, window_bounds = array<i64: 32, 32>}, {pipeline_mode = #tpu.pipeline_mode<synchronous>, transform_indices = @transform_5, window_bounds = array<i64: 32, 1>}, {pipeline_mode = #tpu.pipeline_mode<synchronous>, transform_indices = @transform_6, window_bounds = array<i64: 32, 1>}, {transform_indices = @transform_7, window_bounds = array<i64: 1>}, {transform_indices = @transform_8, window_bounds = array<i64: 1, 16>}]} {
    %c0 = arith.constant 0 : index
    %c0_0 = arith.constant 0 : index
    %0 = vector.load %arg2[%c0, %c0_0] : memref<8x16xf32, #tpu.memory_space<vmem>>, vector<8x16xf32>
    %c0_1 = arith.constant 0 : index
    %c0_2 = arith.constant 0 : index
    %1 = vector.load %arg3[%c0_1, %c0_2] : memref<32x8xf32, #tpu.memory_space<vmem>>, vector<32x8xf32>
    %cst = arith.constant dense<0.000000e+00> : vector<32x16xf32>
    %2 = tpu.matmul %1, %0, %cst {dimension_numbers = #tpu.dot_dimension_numbers<[1], [0], [0], [1], [0, 0, 1, 1], [], []>} : vector<32x8xf32>, vector<8x16xf32>, vector<32x16xf32> -> vector<32x16xf32>
    %c0_3 = arith.constant 0 : index
    %c0_4 = arith.constant 0 : index
    %3 = vector.load %arg4[%c0_3, %c0_4] : memref<32x1xf32, #tpu.memory_space<vmem>>, vector<32x1xf32>
    %4 = vector.broadcast %3 : vector<32x1xf32> to vector<32x16xf32>
    %5 = arith.addf %2, %4 : vector<32x16xf32>
    %cst_5 = arith.constant 0.000000e+00 : f32
    %6 = vector.broadcast %cst_5 : f32 to vector<32x16xf32>
    %7 = arith.maximumf %5, %6 : vector<32x16xf32>
    %c0_6 = arith.constant 0 : index
    %c0_7 = arith.constant 0 : index
    %8 = vector.load %arg5[%c0_6, %c0_7] : memref<32x32xf32, #tpu.memory_space<vmem>>, vector<32x32xf32>
    %cst_8 = arith.constant dense<0.000000e+00> : vector<32x16xf32>
    %9 = tpu.matmul %8, %7, %cst_8 {dimension_numbers = #tpu.dot_dimension_numbers<[1], [0], [0], [1], [0, 0, 1, 1], [], []>} : vector<32x32xf32>, vector<32x16xf32>, vector<32x16xf32> -> vector<32x16xf32>
    %c0_9 = arith.constant 0 : index
    %c0_10 = arith.constant 0 : index
    %10 = vector.load %arg6[%c0_9, %c0_10] : memref<32x1xf32, #tpu.memory_space<vmem>>, vector<32x1xf32>
    %11 = vector.broadcast %10 : vector<32x1xf32> to vector<32x16xf32>
    %12 = arith.addf %9, %11 : vector<32x16xf32>
    %cst_11 = arith.constant 0.000000e+00 : f32
    %13 = vector.broadcast %cst_11 : f32 to vector<32x16xf32>
    %14 = arith.maximumf %12, %13 : vector<32x16xf32>
    %c0_12 = arith.constant 0 : index
    %c0_13 = arith.constant 0 : index
    %15 = vector.load %arg7[%c0_12, %c0_13] : memref<32x1xf32, #tpu.memory_space<vmem>>, vector<32x1xf32>
    %16 = vector.broadcast %15 : vector<32x1xf32> to vector<32x16xf32>
    %17 = arith.mulf %14, %16 : vector<32x16xf32>
    %cst_14 = arith.constant dense<0.000000e+00> : vector<16xf32>
    %18 = vector.multi_reduction <add>, %17, %cst_14 [0] : vector<32x16xf32> to vector<16xf32>
    %19 = vector.shape_cast %18 : vector<16xf32> to vector<1x16xf32>
    %c0_15 = arith.constant 0 : index
    %20 = memref.load %arg8[%c0_15] : memref<1xf32, #tpu.memory_space<smem>>
    %21 = vector.broadcast %20 : f32 to vector<1x16xf32>
    %22 = arith.addf %19, %21 : vector<1x16xf32>
    %23 = arith.negf %22 : vector<1x16xf32>
    %24 = math.exp %23 : vector<1x16xf32>
    %cst_16 = arith.constant 1.000000e+00 : f32
    %25 = vector.broadcast %cst_16 : f32 to vector<1x16xf32>
    %26 = arith.addf %25, %24 : vector<1x16xf32>
    %27 = arith.divf %25, %26 : vector<1x16xf32>
    %c0_17 = arith.constant 0 : index
    %c0_18 = arith.constant 0 : index
    %28 = vector.load %arg9[%c0_17, %c0_18] : memref<1x16xf32, #tpu.memory_space<vmem>>, vector<1x16xf32>
    tpu.vector_store %arg9[%c0_17, %c0_18], %27 {strides = array<i32>} : memref<1x16xf32, #tpu.memory_space<vmem>>, vector<1x16xf32>,
    return
  }
  func.func @transform_0(%arg0: i32) -> i32 {
    %c0_i32 = arith.constant 0 : i32
    %c0_i32_0 = arith.constant 0 : i32
    return %c0_i32 : i32
  }
  func.func @transform_1(%arg0: i32) -> (i32, i32) {
    %c0_i32 = arith.constant 0 : i32
    %c0_i32_0 = arith.constant 0 : i32
    return %c0_i32, %arg0 : i32, i32
  }
  func.func @transform_2(%arg0: i32) -> (i32, i32) {
    %c0_i32 = arith.constant 0 : i32
    %c0_i32_0 = arith.constant 0 : i32
    %c0_i32_1 = arith.constant 0 : i32
    return %c0_i32, %c0_i32_0 : i32, i32
  }
  func.func @transform_3(%arg0: i32) -> (i32, i32) {
    %c0_i32 = arith.constant 0 : i32
    %c0_i32_0 = arith.constant 0 : i32
    %c0_i32_1 = arith.constant 0 : i32
    return %c0_i32, %c0_i32_0 : i32, i32
  }
  func.func @transform_4(%arg0: i32) -> (i32, i32) {
    %c0_i32 = arith.constant 0 : i32
    %c0_i32_0 = arith.constant 0 : i32
    %c0_i32_1 = arith.constant 0 : i32
    return %c0_i32, %c0_i32_0 : i32, i32
  }
  func.func @transform_5(%arg0: i32) -> (i32, i32) {
    %c0_i32 = arith.constant 0 : i32
    %c0_i32_0 = arith.constant 0 : i32
    %c0_i32_1 = arith.constant 0 : i32
    return %c0_i32, %c0_i32_0 : i32, i32
  }
  func.func @transform_6(%arg0: i32) -> (i32, i32) {
    %c0_i32 = arith.constant 0 : i32
    %c0_i32_0 = arith.constant 0 : i32
    %c0_i32_1 = arith.constant 0 : i32
    return %c0_i32, %c0_i32_0 : i32, i32
  }
  func.func @transform_7(%arg0: i32) -> i32 {
    %c0_i32 = arith.constant 0 : i32
    %c0_i32_0 = arith.constant 0 : i32
    return %c0_i32 : i32
  }
  func.func @transform_8(%arg0: i32) -> (i32, i32) {
    %c0_i32 = arith.constant 0 : i32
    %c0_i32_0 = arith.constant 0 : i32
    return %c0_i32, %arg0 : i32, i32
  }
}

</mosaic_0001>

<llo_original>
// kernel: tpu_custom_call.1
$region0: #{tpu_custom_call.1}
  #allocation0 [shape = 'u32[]', space=smem, size = 0x4, offset = 0x4, fixed_abs, tag = 'smem constant byte address 0x4 - core index']
  #allocation1 [shape = 'u32[144,128]{1,0:T(1,128)}', space=vmem, size = 0x12000, scoped, tag = 'internal scratch']
  #allocation2 [shape = 's32[1]{0:T(128)S(6)}', space=smem, size = 0x200, scoped, tag = 'scoped memory for tpu_custom_call.1']
  #allocation3 [shape = 'f32[1]{0:T(128)S(6)}', space=smem, size = 0x200, scoped, tag = 'scoped memory for tpu_custom_call.1']
  %s0 = inlined_call_operand.<no memory space> [shape: s32[1], index: 0, kind: input, shape index: {}]
  %s1 = inlined_call_operand.vmem [shape: f32[8,16], index: 1, kind: input, shape index: {}]
  %s2 = inlined_call_operand.vmem [shape: f32[32,8], index: 2, kind: input, shape index: {}]
  %s3 = inlined_call_operand.vmem [shape: f32[32,1], index: 3, kind: input, shape index: {}]
  %s4 = inlined_call_operand.vmem [shape: f32[32,32], index: 4, kind: input, shape index: {}]
  %s5 = inlined_call_operand.vmem [shape: f32[32,1], index: 5, kind: input, shape index: {}]
  %s6 = inlined_call_operand.vmem [shape: f32[32,1], index: 6, kind: input, shape index: {}]
  %s7 = inlined_call_operand.<no memory space> [shape: f32[1], index: 7, kind: input, shape index: {}]
  %s8 = inlined_call_operand.hbm [shape: f32[1,16], index: 8, kind: output, shape index: {}]
  %s9 = sld [smem:[#allocation0]]
  $region42: #{tpu_custom_call.1} parent=0
    _
  %s11 = ssub.s32 1, %s9
  %s12 = scalar_select 0, %s11, %s9
  %13 = sst [smem:[#allocation2]] %s0
  %14 = sst [smem:[#allocation3]] %s7
  $region1: #{tpu_custom_call.1} parent=0
    #allocation4 [shape = 'u8[512]{0}', space=vmem, size = 0x400, scoped, tag = 'output window, operand 0, single buffered']
    #allocation5 [shape = 's32[1]{0}', space=sflag, size = 0x4, scoped, tag = 'scoped memory for tpu_custom_call.1']
    %15 = vsyncpa [#allocation5], 0
    // Predicated region
    $region2: #{tpu_custom_call.1} parent=1 // pred_check
      _
    $region3: #{tpu_custom_call.1} parent=1 // pred_check_branch
      %17 = sbr.rel (0) target = $region5
    $region4: #{tpu_custom_call.1} parent=1 // pred_region
      _
    $region5: #{tpu_custom_call.1} parent=1 // pred_fallthru
      _
    // Predicated region
    $region6: #{tpu_custom_call.1} parent=1 // pred_check
      _
    $region7: #{tpu_custom_call.1} parent=1 // pred_check_branch
      %19 = sbr.rel (0) target = $region9
    $region8: #{tpu_custom_call.1} parent=1 // pred_region
      _
    $region9: #{tpu_custom_call.1} parent=1 // pred_fallthru
      _
    // Predicated region
    $region10: #{tpu_custom_call.1} parent=1 // pred_check
      _
    $region11: #{tpu_custom_call.1} parent=1 // pred_check_branch
      %21 = sbr.rel (0) target = $region13
    $region12: #{tpu_custom_call.1} parent=1 // pred_region
      _
    $region13: #{tpu_custom_call.1} parent=1 // pred_fallthru
      _
    // Predicated region
    $region14: #{tpu_custom_call.1} parent=1 // pred_check
      _
    $region15: #{tpu_custom_call.1} parent=1 // pred_check_branch
      %23 = sbr.rel (0) target = $region17
    $region16: #{tpu_custom_call.1} parent=1 // pred_region
      _
    $region17: #{tpu_custom_call.1} parent=1 // pred_fallthru
      _
    // Predicated region
    $region18: #{tpu_custom_call.1} parent=1 // pred_check
      _
    $region19: #{tpu_custom_call.1} parent=1 // pred_check_branch
      %25 = sbr.rel (0) target = $region21
    $region20: #{tpu_custom_call.1} parent=1 // pred_region
      _
    $region21: #{tpu_custom_call.1} parent=1 // pred_fallthru
      _
    // Predicated region
    $region22: #{tpu_custom_call.1} parent=1 // pred_check
      _
    $region23: #{tpu_custom_call.1} parent=1 // pred_check_branch
      %27 = sbr.rel (0) target = $region25
    $region24: #{tpu_custom_call.1} parent=1 // pred_region
      _
    $region25: #{tpu_custom_call.1} parent=1 // pred_fallthru
      _
    // Predicated region
    $region26: #{tpu_custom_call.1} parent=1 // pred_check
      _
    $region27: #{tpu_custom_call.1} parent=1 // pred_check_branch
      %29 = sbr.rel (0) target = $region29
    $region28: #{tpu_custom_call.1} parent=1 // pred_region
      _
    $region29: #{tpu_custom_call.1} parent=1 // pred_fallthru
      _
    // Predicated region
    $region30: #{tpu_custom_call.1} parent=1 // pred_check
      _
    $region31: #{tpu_custom_call.1} parent=1 // pred_check_branch
      %31 = sbr.rel (0) target = $region33
    $region32: #{tpu_custom_call.1} parent=1 // pred_region
      _
    $region33: #{tpu_custom_call.1} parent=1 // pred_fallthru
      _
    %v32 = vld [vmem:[%s1] sm:$0xff]
    %v33 = vld [vmem:[%s2] sm:$0xff]
    %v34 = vld [vmem:[%s2 + $0x8] sm:$0xff]
    %v35 = vld [vmem:[%s2 + $0x10] sm:$0xff]
    %v36 = vld [vmem:[%s2 + $0x18] sm:$0xff]
    %v37 = vld [vmem:[%s3] sm:$0xff]
    %v38 = vld [vmem:[%s3 + $0x8] sm:$0xff]
    %v39 = vld [vmem:[%s3 + $0x10] sm:$0xff]
    %v40 = vld [vmem:[%s3 + $0x18] sm:$0xff]
    %42 = vset.pattern.permute.xlu0 0
    %43 = vperm.xlu0 %42, %v37
    %v44 = vpop.permute.xlu0 %43
    %47 = vset.pattern.permute.xlu0 0
    %48 = vperm.xlu0 %47, %v38
    %v49 = vpop.permute.xlu0 %48
    %52 = vset.pattern.permute.xlu0 0
    %53 = vperm.xlu0 %52, %v39
    %v54 = vpop.permute.xlu0 %53
    %57 = vset.pattern.permute.xlu0 0
    %58 = vperm.xlu0 %57, %v40
    %v59 = vpop.permute.xlu0 %58
    %vm61 = vcmask 64512
    %v63 = vsel %vm61, %v33, 0
    %v66 = vsel %vm61, %v34, 0
    %v69 = vsel %vm61, %v35, 0
    %v72 = vsel %vm61, %v36, 0
    %74 = vmatprep.subr.mxu0 0.0
    %75 = vmatpush1.msra.mxu0 0.0
    %76 = vmatprep.subr.mxu0 0.0
    %77 = vmatpush1.msra.mxu0 0.0
    %78 = vmatprep.subr.mxu0 0.0
    %79 = vmatpush1.msra.mxu0 0.0
    %80 = vmatprep.subr.mxu0 0.0
    %81 = vmatpush1.msra.mxu0 0.0
    %82 = vmatprep.subr.mxu0 0.0
    %83 = vmatpush1.msra.mxu0 0.0
    %84 = vmatprep.subr.mxu0 0.0
    %85 = vmatpush1.msra.mxu0 0.0
    %86 = vmatprep.subr.mxu0 0.0
    %87 = vmatpush1.msra.mxu0 0.0
    %88 = vmatprep.subr.mxu0 0.0
    %89 = vmatpush1.msra.mxu0 0.0
    %90 = vmatprep.subr.mxu0 0.0
    %91 = vmatpush1.msra.mxu0 0.0
    %92 = vmatprep.subr.mxu0 0.0
    %93 = vmatpush1.msra.mxu0 0.0
    %94 = vmatprep.subr.mxu0 0.0
    %95 = vmatpush1.msra.mxu0 0.0
    %96 = vmatprep.subr.mxu0 0.0
    %97 = vmatpush1.msra.mxu0 0.0
    %98 = vmatprep.subr.mxu0 0.0
    %99 = vmatpush1.msra.mxu0 0.0
    %100 = vmatprep.subr.mxu0 0.0
    %101 = vmatpush1.msra.mxu0 0.0
    %102 = vmatprep.subr.mxu0 0.0
    %103 = vmatpush1.msra.mxu0 0.0
    %104 = vmatprep.subr.mxu0 0.0
    %105 = vmatpush1.msra.mxu0 %v32
    %106 = vmatprep.subr.mxu0 0.0
    %107 = vmatpush2.msra.mxu0 0.0
    %108 = vmatprep.subr.mxu0 0.0
    %109 = vmatpush2.msra.mxu0 0.0
    %110 = vmatprep.subr.mxu0 0.0
    %111 = vmatpush2.msra.mxu0 0.0
    %112 = vmatprep.subr.mxu0 0.0
    %113 = vmatpush2.msra.mxu0 0.0
    %114 = vmatprep.subr.mxu0 0.0
    %115 = vmatpush2.msra.mxu0 0.0
    %116 = vmatprep.subr.mxu0 0.0
    %117 = vmatpush2.msra.mxu0 0.0
    %118 = vmatprep.subr.mxu0 0.0
    %119 = vmatpush2.msra.mxu0 0.0
    %120 = vmatprep.subr.mxu0 0.0
    %121 = vmatpush2.msra.mxu0 0.0
    %122 = vmatprep.subr.mxu0 0.0
    %123 = vmatpush2.msra.mxu0 0.0
    %124 = vmatprep.subr.mxu0 0.0
    %125 = vmatpush2.msra.mxu0 0.0
    %126 = vmatprep.subr.mxu0 0.0
    %127 = vmatpush2.msra.mxu0 0.0
    %128 = vmatprep.subr.mxu0 0.0
    %129 = vmatpush2.msra.mxu0 0.0
    %130 = vmatprep.subr.mxu0 0.0
    %131 = vmatpush2.msra.mxu0 0.0
    %132 = vmatprep.subr.mxu0 0.0
    %133 = vmatpush2.msra.mxu0 0.0
    %134 = vmatprep.subr.mxu0 0.0
    %135 = vmatpush2.msra.mxu0 0.0
    %136 = vmatprep.subr.mxu0 0.0
    %137 = vmatpush2.msra.mxu0 0.0
    %138 = vmatprep.mubr.f32.mxu0 0.0
    %139 = vmatmul.mubr.f32.gmra.mxu0 %v63
    %v140 = vpop.f32.mrf.mxu0
    %v141 = vadd.f32 %v44, %v140
    %v142 = vpop.f32.mrf.mxu0
    %143 = vmatprep.mubr.f32.mxu0 0.0
    %144 = vmatmul.mubr.f32.gmra.mxu0 %v66
    %v145 = vpop.f32.mrf.mxu0
    %v146 = vadd.f32 %v49, %v145
    %v147 = vpop.f32.mrf.mxu0
    %148 = vmatprep.mubr.f32.mxu0 0.0
    %149 = vmatmul.mubr.f32.gmra.mxu0 %v69
    %v150 = vpop.f32.mrf.mxu0
    %v151 = vadd.f32 %v54, %v150
    %v152 = vpop.f32.mrf.mxu0
    %153 = vmatprep.mubr.f32.mxu0 0.0
    %154 = vmatmul.mubr.f32.gmra.mxu0 %v72
    %v155 = vpop.f32.mrf.mxu0
    %v156 = vadd.f32 %v59, %v155
    %v157 = vpop.f32.mrf.mxu0
    %158 = vdwg.mxu0
    %v159 = vmax.f32 %v141, 0.0
    %v160 = vmax.f32 %v146, 0.0
    %v161 = vmax.f32 %v151, 0.0
    %v162 = vmax.f32 %v156, 0.0
    %v163 = vld [vmem:[%s4] sm:$0xff]
    %v164 = vld [vmem:[%s4 + $0x8] sm:$0xff]
    %v165 = vld [vmem:[%s4 + $0x10] sm:$0xff]
    %v166 = vld [vmem:[%s4 + $0x18] sm:$0xff]
    %v167 = vld [vmem:[%s5] sm:$0xff]
    %v168 = vld [vmem:[%s5 + $0x8] sm:$0xff]
    %v169 = vld [vmem:[%s5 + $0x10] sm:$0xff]
    %v170 = vld [vmem:[%s5 + $0x18] sm:$0xff]
    %172 = vset.pattern.permute.xlu0 0
    %173 = vperm.xlu0 %172, %v167
    %v174 = vpop.permute.xlu0 %173
    %177 = vset.pattern.permute.xlu0 0
    %178 = vperm.xlu0 %177, %v168
    %v179 = vpop.permute.xlu0 %178
    %182 = vset.pattern.permute.xlu0 0
    %183 = vperm.xlu0 %182, %v169
    %v184 = vpop.permute.xlu0 %183
    %187 = vset.pattern.permute.xlu0 0
    %188 = vperm.xlu0 %187, %v170
    %v189 = vpop.permute.xlu0 %188
    %vm191 = vcmask 261120
    %v193 = vsel %vm191, %v163, 0
    %v196 = vsel %vm191, %v164, 0
    %v199 = vsel %vm191, %v165, 0
    %v202 = vsel %vm191, %v166, 0
    %204 = vmatprep.subr.mxu0 0.0
    %205 = vmatpush1.msra.mxu0 0.0
    %206 = vmatprep.subr.mxu0 0.0
    %207 = vmatpush1.msra.mxu0 0.0
    %208 = vmatprep.subr.mxu0 0.0
    %209 = vmatpush1.msra.mxu0 0.0
    %210 = vmatprep.subr.mxu0 0.0
    %211 = vmatpush1.msra.mxu0 0.0
    %212 = vmatprep.subr.mxu0 0.0
    %213 = vmatpush1.msra.mxu0 0.0
    %214 = vmatprep.subr.mxu0 0.0
    %215 = vmatpush1.msra.mxu0 0.0
    %216 = vmatprep.subr.mxu0 0.0
    %217 = vmatpush1.msra.mxu0 0.0
    %218 = vmatprep.subr.mxu0 0.0
    %219 = vmatpush1.msra.mxu0 0.0
    %220 = vmatprep.subr.mxu0 0.0
    %221 = vmatpush1.msra.mxu0 0.0
    %222 = vmatprep.subr.mxu0 0.0
    %223 = vmatpush1.msra.mxu0 0.0
    %224 = vmatprep.subr.mxu0 0.0
    %225 = vmatpush1.msra.mxu0 0.0
    %226 = vmatprep.subr.mxu0 0.0
    %227 = vmatpush1.msra.mxu0 0.0
    %228 = vmatprep.subr.mxu0 0.0
    %229 = vmatpush1.msra.mxu0 %v162
    %230 = vmatprep.subr.mxu0 0.0
    %231 = vmatpush1.msra.mxu0 %v161
    %232 = vmatprep.subr.mxu0 0.0
    %233 = vmatpush1.msra.mxu0 %v160
    %234 = vmatprep.subr.mxu0 0.0
    %235 = vmatpush1.msra.mxu0 %v159
    %236 = vmatprep.subr.mxu0 0.0
    %237 = vmatpush2.msra.mxu0 0.0
    %238 = vmatprep.subr.mxu0 0.0
    %239 = vmatpush2.msra.mxu0 0.0
    %240 = vmatprep.subr.mxu0 0.0
    %241 = vmatpush2.msra.mxu0 0.0
    %242 = vmatprep.subr.mxu0 0.0
    %243 = vmatpush2.msra.mxu0 0.0
    %244 = vmatprep.subr.mxu0 0.0
    %245 = vmatpush2.msra.mxu0 0.0
    %246 = vmatprep.subr.mxu0 0.0
    %247 = vmatpush2.msra.mxu0 0.0
    %248 = vmatprep.subr.mxu0 0.0
    %249 = vmatpush2.msra.mxu0 0.0
    %250 = vmatprep.subr.mxu0 0.0
    %251 = vmatpush2.msra.mxu0 0.0
    %252 = vmatprep.subr.mxu0 0.0
    %253 = vmatpush2.msra.mxu0 0.0
    %254 = vmatprep.subr.mxu0 0.0
    %255 = vmatpush2.msra.mxu0 0.0
    %256 = vmatprep.subr.mxu0 0.0
    %257 = vmatpush2.msra.mxu0 0.0
    %258 = vmatprep.subr.mxu0 0.0
    %259 = vmatpush2.msra.mxu0 0.0
    %260 = vmatprep.subr.mxu0 0.0
    %261 = vmatpush2.msra.mxu0 0.0
    %262 = vmatprep.subr.mxu0 0.0
    %263 = vmatpush2.msra.mxu0 0.0
    %264 = vmatprep.subr.mxu0 0.0
    %265 = vmatpush2.msra.mxu0 0.0
    %266 = vmatprep.subr.mxu0 0.0
    %267 = vmatpush2.msra.mxu0 0.0
    %268 = vmatprep.mubr.f32.mxu0 0.0
    %269 = vmatmul.mubr.f32.gmra.mxu0 %v193
    %v270 = vpop.f32.mrf.mxu0
    %v271 = vadd.f32 %v174, %v270
    %v272 = vpop.f32.mrf.mxu0
    %273 = vmatprep.mubr.f32.mxu0 0.0
    %274 = vmatmul.mubr.f32.gmra.mxu0 %v196
    %v275 = vpop.f32.mrf.mxu0
    %v276 = vadd.f32 %v179, %v275
    %v277 = vpop.f32.mrf.mxu0
    %278 = vmatprep.mubr.f32.mxu0 0.0
    %279 = vmatmul.mubr.f32.gmra.mxu0 %v199
    %v280 = vpop.f32.mrf.mxu0
    %v281 = vadd.f32 %v184, %v280
    %v282 = vpop.f32.mrf.mxu0
    %283 = vmatprep.mubr.f32.mxu0 0.0
    %284 = vmatmul.mubr.f32.gmra.mxu0 %v202
    %v285 = vpop.f32.mrf.mxu0
    %v286 = vadd.f32 %v189, %v285
    %v287 = vpop.f32.mrf.mxu0
    %288 = vdwg.mxu0
    %v289 = vmax.f32 %v271, 0.0
    %v290 = vmax.f32 %v276, 0.0
    %v291 = vmax.f32 %v281, 0.0
    %v292 = vmax.f32 %v286, 0.0
    %v293 = vld [vmem:[%s6] sm:$0xff]
    %v294 = vld [vmem:[%s6 + $0x8] sm:$0xff]
    %v295 = vld [vmem:[%s6 + $0x10] sm:$0xff]
    %v296 = vld [vmem:[%s6 + $0x18] sm:$0xff]
    %298 = vset.pattern.permute.xlu0 0
    %299 = vperm.xlu0 %298, %v293
    %v300 = vpop.permute.xlu0 %299
    %303 = vset.pattern.permute.xlu0 0
    %304 = vperm.xlu0 %303, %v294
    %v305 = vpop.permute.xlu0 %304
    %308 = vset.pattern.permute.xlu0 0
    %309 = vperm.xlu0 %308, %v295
    %v310 = vpop.permute.xlu0 %309
    %313 = vset.pattern.permute.xlu0 0
    %314 = vperm.xlu0 %313, %v296
    %v315 = vpop.permute.xlu0 %314
    %v317 = vmul.f32 %v289, %v300
    %v318 = vmul.f32 %v290, %v305
    %v319 = vmul.f32 %v291, %v310
    %v320 = vmul.f32 %v292, %v315
    %vm321 = vcmask 130048
    %v322 = vsel %vm321, %v317, 0.0
    %v323 = vsel %vm321, %v318, 0.0
    %v324 = vadd.f32 %v322, %v323
    %v325 = vsel %vm321, %v319, 0.0
    %v326 = vadd.f32 %v324, %v325
    %v327 = vsel %vm321, %v320, 0.0
    %v328 = vadd.f32 %v326, %v327
    %v329 = vrot.slane %v328, 4
    %v330 = vadd.f32 %v328, %v329
    %v331 = vrot.slane %v330, 2
    %v332 = vadd.f32 %v330, %v331
    %v333 = vrot.slane %v332, 1
    %v334 = vadd.f32 %v332, %v333
    %s335 = sld [smem:[#allocation3]]
    %v336 = vstv %s335
    %v337 = vadd.f32 %v334, %v336
    %v338 = vxor.u32 %v337, 2147483648
    %v339 = vmul.f32 %v338, 1.442695
    %v340 = vpow.pop %v339
    %v341 = vadd.f32 %v340, 1.0
    %v342 = vrcp.pop %v341
    %v343 = vmul.f32 1.0, %v342
    %vm344 = vcmask 122880
    %345 = vst.msk [vmem:[#allocation4] sm:$0x1] %vm344, %v343
    // Predicated region
    $region34: #{tpu_custom_call.1} parent=1 // pred_check
      _
    $region35: #{tpu_custom_call.1} parent=1 // pred_check_branch
      %347 = sbr.rel (0) target = $region37
    $region36: #{tpu_custom_call.1} parent=1 // pred_region
      %s349 = ssub.s32 16, 16
      %350 = vsyncadd [#allocation5], %s349
      %s352 = sshll.u32 [#allocation4], 4
      %s353 = int_to_ptr.vmem [resolvable:$true] %s352
      %355 = dma.vmem_to_hbm [thread:$0]  %s353, 16, %s8, [#allocation5]
    $region37: #{tpu_custom_call.1} parent=1 // pred_fallthru
      _
    // Predicated region
    $region38: #{tpu_custom_call.1} parent=1 // pred_check
      _
    $region39: #{tpu_custom_call.1} parent=1 // pred_check_branch
      %357 = sbr.rel (0) target = $region41
    $region40: #{tpu_custom_call.1} parent=1 // pred_region
      %358 = dma.done [#allocation5], 16
    $region41: #{tpu_custom_call.1} parent=1 // pred_fallthru
      _
    %359 = vsyncpa [#allocation5], 1

</llo_original>
